<compile_context>
chip_gen: v7x
topology: tpu7x:2x2x1
jax: 0.10.0
libtpu: 0.0.40
codegen_flags: <defaults>
</compile_context>

<pallas_src>
import functools
import math

import jax
import jax.numpy as jnp
from jax.experimental import pallas as pl
from jax.experimental.pallas import tpu as pltpu


def _fcn_head_kernel(x_ref, w1_ref, bias_ref, w2_ref, b2_ref, o_ref, slab_ref,
                     *, Cin, Cout, Mv, Wp):
    # Per grid step (one batch element), channel-first layouts:
    #   x_ref:    (Cin, Mext)         zero-padded image, spatially flattened
    #   w1_ref:   (Cmid_pad, 9*Cin)   3x3 conv weights * BN scale, tap-major K
    #   bias_ref: (Cmid_pad, 1)       folded BN bias
    #   w2_ref:   (Cmid_pad, Cout)    1x1 conv weights
    #   b2_ref:   (Cout, 1)           1x1 conv bias
    #   o_ref:    (Cout, Mv)          lane-dense output (junk cols dropped by caller)
    #   slab_ref: (9*Cin, Mv)         VMEM im2col scratch
    #
    # im2col: each 3x3 tap is one contiguous lane-offset slice of the flattened image.
    for t in range(9):
        dh, dw = t // 3, t % 3
        off = dh * Wp + dw
        slab_ref[t * Cin:(t + 1) * Cin, :] = x_ref[:, off:off + Mv]

    # Conv3x3 (BN scale pre-folded into w1) as ONE MXU contraction: (8,144)@(144,Mv).
    acc = jnp.dot(w1_ref[...], slab_ref[...], preferred_element_type=jnp.float32)

    # Folded BN bias + ReLU on full (8, Mv) vreg tiles.
    y = jnp.maximum(acc + bias_ref[...], 0.0)
    # Dropout(0.1): identity in eval mode.

    # 1x1 conv + bias on the VPU/XLU (Cout tiny) -- keep the MXU out of the epilogue.
    for c in range(Cout):
        row = jnp.sum(y * w2_ref[:, c:c + 1], axis=0, keepdims=True) + b2_ref[c:c + 1, :]
        o_ref[c:c + 1, :] = row.astype(o_ref.dtype)


def fcn_head_forward(x_nchw, w1_oihw, gamma, beta, run_mean, run_var, w2_oihw, b2,
                     eps=1e-5):
    """Fused _FCNHead forward. Input/output are NCHW like PyTorch (inference mode)."""
    N, Cin, H, W = x_nchw.shape
    Cmid = w1_oihw.shape[0]
    Cout = w2_oihw.shape[0]
    Cmid_pad = max(8, -(-Cmid // 8) * 8)          # full 8-sublane tiles

    # Lane-aligned flattened row width: smallest Wp >= W+2 with H*Wp % 128 == 0
    # (unmasked full-width loads/stores), unless that would more than double the columns.
    step = 128 // math.gcd(H, 128)
    Wp = -(-(W + 2) // step) * step
    if Wp > 2 * (W + 2):
        Wp = W + 2
    Mv = H * Wp                  # valid + junk columns per image (written by kernel)
    Mext = (H + 3) * Wp          # flattened padded length; max tap slice 2*Wp+2+Mv <= Mext
    K = 9 * Cin

    # Fold BN (inference) into the conv1 weights + a per-channel bias (all at trace time).
    scale = gamma / jnp.sqrt(run_var + eps)                         # (Cmid,)
    bias = beta - run_mean * scale                                  # (Cmid,)
    w1_folded = w1_oihw * scale[:, None, None, None]                # (Cmid, Cin, 3, 3)
    # Pack as (Cmid_pad, 9*Cin), K index = (dh*3+dw)*Cin + cin (matches the im2col slab).
    w1_k = jnp.transpose(w1_folded, (0, 2, 3, 1)).reshape(Cmid, K)
    w1_k = jnp.pad(w1_k, ((0, Cmid_pad - Cmid), (0, 0)))
    bias_k = jnp.pad(bias.reshape(Cmid, 1), ((0, Cmid_pad - Cmid), (0, 0)))
    w2_k = jnp.pad(w2_oihw.reshape(Cout, Cmid).T,
                   ((0, Cmid_pad - Cmid), (0, 0)))                  # (Cmid_pad, Cout)
    b2_k = b2.reshape(Cout, 1)

    # Zero halo (1 row top, 2 rows bottom, 1 col left, Wp-1-W cols right) + spatial flatten.
    x_flat = jnp.pad(x_nchw, ((0, 0), (0, 0), (1, 2), (1, Wp - 1 - W))).reshape(N, Cin, Mext)

    kernel = functools.partial(_fcn_head_kernel, Cin=Cin, Cout=Cout, Mv=Mv, Wp=Wp)

    out_flat = pl.pallas_call(
        kernel,
        out_shape=jax.ShapeDtypeStruct((N, Cout, Mv), jnp.float32),
        grid=(N,),
        in_specs=[
            pl.BlockSpec((None, Cin, Mext), lambda n: (n, 0, 0)),
            pl.BlockSpec((Cmid_pad, K), lambda n: (0, 0)),
            pl.BlockSpec((Cmid_pad, 1), lambda n: (0, 0)),
            pl.BlockSpec((Cmid_pad, Cout), lambda n: (0, 0)),
            pl.BlockSpec((Cout, 1), lambda n: (0, 0)),
        ],
        out_specs=pl.BlockSpec((None, Cout, Mv), lambda n: (n, 0, 0)),
        scratch_shapes=[pltpu.VMEM((K, Mv), jnp.float32)],
        compiler_params=pltpu.CompilerParams(dimension_semantics=("parallel",)),
    )(x_flat.astype(jnp.float32),
      w1_k.astype(jnp.float32),
      bias_k.astype(jnp.float32),
      w2_k.astype(jnp.float32),
      b2_k.astype(jnp.float32))

    # Drop the junk columns (they only ever saw the zero halo), yielding NCHW directly.
    return out_flat.reshape(N, Cout, H, Wp)[:, :, :, :W]


def _reference_forward(x_nchw, w1_oihw, gamma, beta, run_mean, run_var, w2_oihw, b2,
                       eps=1e-5):
    """Pure-JAX reference (same inference semantics) for a correctness check."""
    dn = ("NCHW", "OIHW", "NCHW")
    y = jax.lax.conv_general_dilated(x_nchw, w1_oihw, (1, 1), "SAME",
                                     dimension_numbers=dn)
    scale = gamma / jnp.sqrt(run_var + eps)
    bias = beta - run_mean * scale
    y = y * scale[None, :, None, None] + bias[None, :, None, None]
    y = jnp.maximum(y, 0.0)
    out = jax.lax.conv_general_dilated(y, w2_oihw, (1, 1), "VALID",
                                       dimension_numbers=dn)
    return out + b2[None, :, None, None]


if __name__ == "__main__":
    # _FCNHead(in_channels=16, out_channels=1): inter_channels = 16 // 4 = 4
    N, Cin, H, W = 2, 16, 16, 16
    Cmid, Cout = Cin // 4, 1

    key = jax.random.PRNGKey(0)
    k = jax.random.split(key, 7)
    x = jax.random.normal(k[0], (N, Cin, H, W), dtype=jnp.float32)

    # Deterministic synthetic parameters (shapes from the module __init__).
    w1 = jax.random.normal(k[1], (Cmid, Cin, 3, 3), dtype=jnp.float32) * 0.1   # conv3x3, no bias
    gamma = 1.0 + 0.1 * jax.random.normal(k[2], (Cmid,), dtype=jnp.float32)    # BN weight
    beta = 0.1 * jax.random.normal(k[3], (Cmid,), dtype=jnp.float32)           # BN bias
    run_mean = 0.05 * jax.random.normal(k[4], (Cmid,), dtype=jnp.float32)      # BN running mean
    run_var = jnp.abs(jax.random.normal(k[5], (Cmid,), dtype=jnp.float32)) + 0.5  # BN running var
    w2 = jax.random.normal(k[6], (Cout, Cmid, 1, 1), dtype=jnp.float32) * 0.1  # conv1x1
    b2 = jnp.arange(Cout, dtype=jnp.float32) * 0.01 + 0.02                     # conv1x1 bias

    out = fcn_head_forward(x, w1, gamma, beta, run_mean, run_var, w2, b2)
    out = jax.block_until_ready(out)

    ref = _reference_forward(x, w1, gamma, beta, run_mean, run_var, w2, b2)
    assert out.shape == (N, Cout, H, W), out.shape
    assert jnp.allclose(out, ref, atol=1e-4, rtol=1e-4), float(jnp.max(jnp.abs(out - ref)))

    print("KERNEL_OK")
</pallas_src>

<mosaic_0001>
module attributes {stable_mosaic.version = 11 : i64} {
  func.func @_fcn_head_kernel(%arg0: i32, %arg1: memref<1x16x456xf32, #tpu.memory_space<vmem>>, %arg2: memref<8x144xf32, #tpu.memory_space<vmem>>, %arg3: memref<8x1xf32, #tpu.memory_space<vmem>>, %arg4: memref<8x1xf32, #tpu.memory_space<vmem>>, %arg5: memref<1x1xf32, #tpu.memory_space<vmem>>, %arg6: memref<1x1x384xf32, #tpu.memory_space<vmem>>, %arg7: memref<144x384xf32, #tpu.memory_space<vmem>>) attributes {dimension_semantics = [#tpu.dimension_semantics<parallel>], iteration_bounds = array<i64: 2>, scalar_prefetch = 0 : i64, scratch_operands = 1 : i64, tpu.core_type = #tpu.core_type<tc>, window_params = [{transform_indices = @transform_0, window_bounds = array<i64: 1, 16, 456>}, {pipeline_mode = #tpu.pipeline_mode<synchronous>, transform_indices = @transform_1, window_bounds = array<i64: 8, 144>}, {pipeline_mode = #tpu.pipeline_mode<synchronous>, transform_indices = @transform_2, window_bounds = array<i64: 8, 1>}, {pipeline_mode = #tpu.pipeline_mode<synchronous>, transform_indices = @transform_3, window_bounds = array<i64: 8, 1>}, {pipeline_mode = #tpu.pipeline_mode<synchronous>, transform_indices = @transform_4, window_bounds = array<i64: 1, 1>}, {transform_indices = @transform_5, window_bounds = array<i64: 1, 1, 384>}]} {
    %c0 = arith.constant 0 : index
    %c0_0 = arith.constant 0 : index
    %c0_1 = arith.constant 0 : index
    %0 = vector.load %arg1[%c0, %c0_0, %c0_1] : memref<1x16x456xf32, #tpu.memory_space<vmem>>, vector<1x16x384xf32>
    %1 = vector.shape_cast %0 : vector<1x16x384xf32> to vector<16x384xf32>
    %c0_2 = arith.constant 0 : index
    %c0_3 = arith.constant 0 : index
    %2 = vector.load %arg7[%c0_2, %c0_3] : memref<144x384xf32, #tpu.memory_space<vmem>>, vector<16x384xf32>
    tpu.vector_store %arg7[%c0_2, %c0_3], %1 {strides = array<i32>} : memref<144x384xf32, #tpu.memory_space<vmem>>, vector<16x384xf32>,
    %c0_4 = arith.constant 0 : index
    %c0_5 = arith.constant 0 : index
    %c1 = arith.constant 1 : index
    %3 = vector.load %arg1[%c0_4, %c0_5, %c1] : memref<1x16x456xf32, #tpu.memory_space<vmem>>, vector<1x16x384xf32>
    %4 = vector.shape_cast %3 : vector<1x16x384xf32> to vector<16x384xf32>
    %c16 = arith.constant 16 : index
    %c0_6 = arith.constant 0 : index
    %5 = vector.load %arg7[%c16, %c0_6] : memref<144x384xf32, #tpu.memory_space<vmem>>, vector<16x384xf32>
    tpu.vector_store %arg7[%c16, %c0_6], %4 {strides = array<i32>} : memref<144x384xf32, #tpu.memory_space<vmem>>, vector<16x384xf32>,
    %c0_7 = arith.constant 0 : index
    %c0_8 = arith.constant 0 : index
    %c2 = arith.constant 2 : index
    %6 = vector.load %arg1[%c0_7, %c0_8, %c2] : memref<1x16x456xf32, #tpu.memory_space<vmem>>, vector<1x16x384xf32>
    %7 = vector.shape_cast %6 : vector<1x16x384xf32> to vector<16x384xf32>
    %c32 = arith.constant 32 : index
    %c0_9 = arith.constant 0 : index
    %8 = vector.load %arg7[%c32, %c0_9] : memref<144x384xf32, #tpu.memory_space<vmem>>, vector<16x384xf32>
    tpu.vector_store %arg7[%c32, %c0_9], %7 {strides = array<i32>} : memref<144x384xf32, #tpu.memory_space<vmem>>, vector<16x384xf32>,
    %c0_10 = arith.constant 0 : index
    %c0_11 = arith.constant 0 : index
    %c24 = arith.constant 24 : index
    %9 = vector.load %arg1[%c0_10, %c0_11, %c24] : memref<1x16x456xf32, #tpu.memory_space<vmem>>, vector<1x16x384xf32>
    %10 = vector.shape_cast %9 : vector<1x16x384xf32> to vector<16x384xf32>
    %c48 = arith.constant 48 : index
    %c0_12 = arith.constant 0 : index
    %11 = vector.load %arg7[%c48, %c0_12] : memref<144x384xf32, #tpu.memory_space<vmem>>, vector<16x384xf32>
    tpu.vector_store %arg7[%c48, %c0_12], %10 {strides = array<i32>} : memref<144x384xf32, #tpu.memory_space<vmem>>, vector<16x384xf32>,
    %c0_13 = arith.constant 0 : index
    %c0_14 = arith.constant 0 : index
    %c25 = arith.constant 25 : index
    %12 = vector.load %arg1[%c0_13, %c0_14, %c25] : memref<1x16x456xf32, #tpu.memory_space<vmem>>, vector<1x16x384xf32>
    %13 = vector.shape_cast %12 : vector<1x16x384xf32> to vector<16x384xf32>
    %c64 = arith.constant 64 : index
    %c0_15 = arith.constant 0 : index
    %14 = vector.load %arg7[%c64, %c0_15] : memref<144x384xf32, #tpu.memory_space<vmem>>, vector<16x384xf32>
    tpu.vector_store %arg7[%c64, %c0_15], %13 {strides = array<i32>} : memref<144x384xf32, #tpu.memory_space<vmem>>, vector<16x384xf32>,
    %c0_16 = arith.constant 0 : index
    %c0_17 = arith.constant 0 : index
    %c26 = arith.constant 26 : index
    %15 = vector.load %arg1[%c0_16, %c0_17, %c26] : memref<1x16x456xf32, #tpu.memory_space<vmem>>, vector<1x16x384xf32>
    %16 = vector.shape_cast %15 : vector<1x16x384xf32> to vector<16x384xf32>
    %c80 = arith.constant 80 : index
    %c0_18 = arith.constant 0 : index
    %17 = vector.load %arg7[%c80, %c0_18] : memref<144x384xf32, #tpu.memory_space<vmem>>, vector<16x384xf32>
    tpu.vector_store %arg7[%c80, %c0_18], %16 {strides = array<i32>} : memref<144x384xf32, #tpu.memory_space<vmem>>, vector<16x384xf32>,
    %c0_19 = arith.constant 0 : index
    %c0_20 = arith.constant 0 : index
    %c48_21 = arith.constant 48 : index
    %18 = vector.load %arg1[%c0_19, %c0_20, %c48_21] : memref<1x16x456xf32, #tpu.memory_space<vmem>>, vector<1x16x384xf32>
    %19 = vector.shape_cast %18 : vector<1x16x384xf32> to vector<16x384xf32>
    %c96 = arith.constant 96 : index
    %c0_22 = arith.constant 0 : index
    %20 = vector.load %arg7[%c96, %c0_22] : memref<144x384xf32, #tpu.memory_space<vmem>>, vector<16x384xf32>
    tpu.vector_store %arg7[%c96, %c0_22], %19 {strides = array<i32>} : memref<144x384xf32, #tpu.memory_space<vmem>>, vector<16x384xf32>,
    %c0_23 = arith.constant 0 : index
    %c0_24 = arith.constant 0 : index
    %c49 = arith.constant 49 : index
    %21 = vector.load %arg1[%c0_23, %c0_24, %c49] : memref<1x16x456xf32, #tpu.memory_space<vmem>>, vector<1x16x384xf32>
    %22 = vector.shape_cast %21 : vector<1x16x384xf32> to vector<16x384xf32>
    %c112 = arith.constant 112 : index
    %c0_25 = arith.constant 0 : index
    %23 = vector.load %arg7[%c112, %c0_25] : memref<144x384xf32, #tpu.memory_space<vmem>>, vector<16x384xf32>
    tpu.vector_store %arg7[%c112, %c0_25], %22 {strides = array<i32>} : memref<144x384xf32, #tpu.memory_space<vmem>>, vector<16x384xf32>,
    %c0_26 = arith.constant 0 : index
    %c0_27 = arith.constant 0 : index
    %c50 = arith.constant 50 : index
    %24 = vector.load %arg1[%c0_26, %c0_27, %c50] : memref<1x16x456xf32, #tpu.memory_space<vmem>>, vector<1x16x384xf32>
    %25 = vector.shape_cast %24 : vector<1x16x384xf32> to vector<16x384xf32>
    %c128 = arith.constant 128 : index
    %c0_28 = arith.constant 0 : index
    %26 = vector.load %arg7[%c128, %c0_28] : memref<144x384xf32, #tpu.memory_space<vmem>>, vector<16x384xf32>
    tpu.vector_store %arg7[%c128, %c0_28], %25 {strides = array<i32>} : memref<144x384xf32, #tpu.memory_space<vmem>>, vector<16x384xf32>,
    %c0_29 = arith.constant 0 : index
    %c0_30 = arith.constant 0 : index
    %27 = vector.load %arg2[%c0_29, %c0_30] : memref<8x144xf32, #tpu.memory_space<vmem>>, vector<8x144xf32>
    %c0_31 = arith.constant 0 : index
    %c0_32 = arith.constant 0 : index
    %28 = vector.load %arg7[%c0_31, %c0_32] : memref<144x384xf32, #tpu.memory_space<vmem>>, vector<144x384xf32>
    %cst = arith.constant dense<0.000000e+00> : vector<8x384xf32>
    %29 = tpu.matmul %27, %28, %cst {dimension_numbers = #tpu.dot_dimension_numbers<[1], [0], [0], [1], [0, 0, 1, 1], [], []>} : vector<8x144xf32>, vector<144x384xf32>, vector<8x384xf32> -> vector<8x384xf32>
    %c0_33 = arith.constant 0 : index
    %c0_34 = arith.constant 0 : index
    %30 = vector.load %arg3[%c0_33, %c0_34] : memref<8x1xf32, #tpu.memory_space<vmem>>, vector<8x1xf32>
    %31 = vector.broadcast %30 : vector<8x1xf32> to vector<8x384xf32>
    %32 = arith.addf %29, %31 : vector<8x384xf32>
    %cst_35 = arith.constant 0.000000e+00 : f32
    %33 = vector.broadcast %cst_35 : f32 to vector<8x384xf32>
    %34 = arith.maximumf %32, %33 : vector<8x384xf32>
    %c0_36 = arith.constant 0 : index
    %c0_37 = arith.constant 0 : index
    %35 = vector.load %arg4[%c0_36, %c0_37] : memref<8x1xf32, #tpu.memory_space<vmem>>, vector<8x1xf32>
    %36 = vector.broadcast %35 : vector<8x1xf32> to vector<8x384xf32>
    %37 = arith.mulf %34, %36 : vector<8x384xf32>
    %cst_38 = arith.constant dense<0.000000e+00> : vector<384xf32>
    %38 = vector.multi_reduction <add>, %37, %cst_38 [0] : vector<8x384xf32> to vector<384xf32>
    %39 = vector.shape_cast %38 : vector<384xf32> to vector<1x384xf32>
    %c0_39 = arith.constant 0 : index
    %c0_40 = arith.constant 0 : index
    %40 = vector.load %arg5[%c0_39, %c0_40] : memref<1x1xf32, #tpu.memory_space<vmem>>, vector<1x1xf32>
    %41 = vector.broadcast %40 : vector<1x1xf32> to vector<1x384xf32>
    %42 = arith.addf %39, %41 : vector<1x384xf32>
    %c0_41 = arith.constant 0 : index
    %c0_42 = arith.constant 0 : index
    %c0_43 = arith.constant 0 : index
    %43 = vector.load %arg6[%c0_41, %c0_42, %c0_43] : memref<1x1x384xf32, #tpu.memory_space<vmem>>, vector<1x1x384xf32>
    %44 = vector.shape_cast %43 : vector<1x1x384xf32> to vector<1x384xf32>
    %45 = vector.shape_cast %42 : vector<1x384xf32> to vector<1x1x384xf32>
    tpu.vector_store %arg6[%c0_41, %c0_42, %c0_43], %45 {strides = array<i32>} : memref<1x1x384xf32, #tpu.memory_space<vmem>>, vector<1x1x384xf32>,
    return
  }
  func.func @transform_0(%arg0: i32) -> (i32, i32, i32) {
    %c0_i32 = arith.constant 0 : i32
    %c0_i32_0 = arith.constant 0 : i32
    %c0_i32_1 = arith.constant 0 : i32
    return %arg0, %c0_i32, %c0_i32_0 : i32, i32, i32
  }
  func.func @transform_1(%arg0: i32) -> (i32, i32) {
    %c0_i32 = arith.constant 0 : i32
    %c0_i32_0 = arith.constant 0 : i32
    %c0_i32_1 = arith.constant 0 : i32
    return %c0_i32, %c0_i32_0 : i32, i32
  }
  func.func @transform_2(%arg0: i32) -> (i32, i32) {
    %c0_i32 = arith.constant 0 : i32
    %c0_i32_0 = arith.constant 0 : i32
    %c0_i32_1 = arith.constant 0 : i32
    return %c0_i32, %c0_i32_0 : i32, i32
  }
  func.func @transform_3(%arg0: i32) -> (i32, i32) {
    %c0_i32 = arith.constant 0 : i32
    %c0_i32_0 = arith.constant 0 : i32
    %c0_i32_1 = arith.constant 0 : i32
    return %c0_i32, %c0_i32_0 : i32, i32
  }
  func.func @transform_4(%arg0: i32) -> (i32, i32) {
    %c0_i32 = arith.constant 0 : i32
    %c0_i32_0 = arith.constant 0 : i32
    %c0_i32_1 = arith.constant 0 : i32
    return %c0_i32, %c0_i32_0 : i32, i32
  }
  func.func @transform_5(%arg0: i32) -> (i32, i32, i32) {
    %c0_i32 = arith.constant 0 : i32
    %c0_i32_0 = arith.constant 0 : i32
    %c0_i32_1 = arith.constant 0 : i32
    return %arg0, %c0_i32, %c0_i32_0 : i32, i32, i32
  }
}

</mosaic_0001>

<llo_original>
// kernel: tpu_custom_call.1
$region0: #{tpu_custom_call.1}
  #allocation0 [shape = 'u32[]', space=smem, size = 0x4, offset = 0x4, fixed_abs, tag = 'smem constant byte address 0x4 - core index']
  #allocation1 [shape = 'u32[144,128]{1,0:T(1,128)}', space=vmem, size = 0x12000, scoped, tag = 'internal scratch']
  #allocation2 [shape = 'f32[144,384]{1,0:T(8,128)}', space=vmem, size = 0x36000, scoped, tag = 'scratch operand']
  #allocation3 [shape = 'f32[1,1]{1,0:T(1,128)S(1)}', space=vmem, size = 0x200, scoped, tag = 'scoped memory for tpu_custom_call.1']
  %s0 = inlined_call_operand.hbm [shape: f32[2,16,456], index: 0, kind: input, shape index: {}]
  %s1 = inlined_call_operand.vmem [shape: f32[8,144], index: 1, kind: input, shape index: {}]
  %s2 = inlined_call_operand.vmem [shape: f32[8,1], index: 2, kind: input, shape index: {}]
  %s3 = inlined_call_operand.vmem [shape: f32[8,1], index: 3, kind: input, shape index: {}]
  %s4 = inlined_call_operand.<no memory space> [shape: f32[1,1], index: 4, kind: input, shape index: {}]
  %s5 = inlined_call_operand.hbm [shape: f32[2,1,384], index: 5, kind: output, shape index: {}]
  %s6 = sld [smem:[#allocation0]]
  $region57: #{tpu_custom_call.1} parent=0
    _
  %s8 = ssub.s32 1, %s6
  %s9 = scalar_select 0, %s8, %s6
  %v10 = vstv %s4
  %11 = vst [vmem:[#allocation3] sm:$0x1] %v10
  $region1: #{tpu_custom_call.1} parent=0
    #allocation4 [shape = 'u8[65536]{0}', space=vmem, size = 0x10000, scoped, tag = 'input window, operand 0']
    #allocation5 [shape = 's32[2]{0}', space=sflag, size = 0x8, scoped, tag = 'scoped memory for tpu_custom_call.1']
    #allocation6 [shape = 's32[2]{0}', space=sflag, size = 0x8, scoped, tag = 'scoped memory for tpu_custom_call.1']
    #allocation7 [shape = 'u8[3072]{0}', space=vmem, size = 0xc00, scoped, tag = 'output window, operand 0']
    %12 = vsyncpa [#allocation5], 0
    %s13 = scalar_lea.sflag [#allocation5], 1
    %14 = vsyncpa %s13, 0
    %15 = vsyncpa [#allocation6], 0
    %s16 = scalar_lea.sflag [#allocation6], 1
    %17 = vsyncpa %s16, 0
    loop: start=0, step=1, limit=4
    $region2: #{tpu_custom_call.1} parent=1 // loop_pre_header
      _
    $region3: #{tpu_custom_call.1} parent=1 // loop_header
      %s19 = sphi 0, %s23
      %p20 = scmp.ge.s32.totalorder %s19, 4
      %s29 = sphi 0, %s31
      %s32 = sphi 0, %s29
      %s33 = sphi 0, %s32
      %s49 = sphi 0, %s33
      %s53 = sphi 0, %s53
      %s55 = sphi 0, %s53
      %s56 = sphi 0, %s55
      %s70 = sphi 0, %s56
      %s74 = sphi 0, %s74
      %s76 = sphi 0, %s74
      %s77 = sphi 0, %s76
      %s91 = sphi 0, %s77
      %s95 = sphi 0, %s95
      %s97 = sphi 0, %s95
      %s98 = sphi 0, %s97
      %s112 = sphi 0, %s98
      %s116 = sphi 0, %s116
      %s118 = sphi 0, %s116
      %s119 = sphi 0, %s118
      %s133 = sphi 0, %s119
      %s139 = sphi 0, %s141
      %s142 = sphi 0, %s139
      %s143 = sphi 0, %s142
      %s159 = sphi 0, %s143
    $region4: #{tpu_custom_call.1} parent=1 // loop_header_branch
      %22 = sbr.rel (%p20) target = $region8
    $region5: #{tpu_custom_call.1} parent=1 // loop_body
      %s24 = ssub.s32 %s19, 1
      %s25 = ssub.s32 %s19, 2
      %s26 = sadd.s32 %s19, 1
      %s27 = ssub.s32 %s19, %s26
      %p28 = scmp.eq.s32.totalorder %s27, 0
      %s30 = sadd.s32 %s29, 1
      %s31 = scalar_select %p28, %s29, %s30
      %p34 = pneg %p28
      %p35 = scmp.eq.s32.totalorder %s19, 1
      %p36 = por %p34, %p35
      %p37 = scmp.ne.s32.totalorder %s29, %s32
      %p38 = scmp.eq.s32.totalorder %s19, 0
      %p39 = por %p37, %p38
      %p40 = scmp.ne.s32.totalorder %s29, %s32
      %p41 = scmp.eq.s32.totalorder %s24, 1
      %p42 = por %p40, %p41
      %p43 = scmp.ne.s32.totalorder %s32, %s33
      %p44 = scmp.eq.s32.totalorder %s24, 0
      %p45 = por %p43, %p44
      %p46 = scmp.ne.s32.totalorder %s32, %s33
      %p47 = scmp.eq.s32.totalorder %s25, 1
      %p48 = por %p46, %p47
      %p50 = scmp.ne.s32.totalorder %s33, %s49
      %p51 = scmp.eq.s32.totalorder %s25, 0
      %p52 = por %p50, %p51
      %s54 = sadd.s32 %s53, 1
      %p57 = scmp.eq.s32.totalorder %s19, 1
      %p58 = scmp.ne.s32.totalorder %s53, %s55
      %p59 = scmp.eq.s32.totalorder %s19, 0
      %p60 = por %p58, %p59
      %p61 = scmp.ne.s32.totalorder %s53, %s55
      %p62 = scmp.eq.s32.totalorder %s24, 1
      %p63 = por %p61, %p62
      %p64 = scmp.ne.s32.totalorder %s55, %s56
      %p65 = scmp.eq.s32.totalorder %s24, 0
      %p66 = por %p64, %p65
      %p67 = scmp.ne.s32.totalorder %s55, %s56
      %p68 = scmp.eq.s32.totalorder %s25, 1
      %p69 = por %p67, %p68
      %p71 = scmp.ne.s32.totalorder %s56, %s70
      %p72 = scmp.eq.s32.totalorder %s25, 0
      %p73 = por %p71, %p72
      %s75 = sadd.s32 %s74, 1
      %p78 = scmp.eq.s32.totalorder %s19, 1
      %p79 = scmp.ne.s32.totalorder %s74, %s76
      %p80 = scmp.eq.s32.totalorder %s19, 0
      %p81 = por %p79, %p80
      %p82 = scmp.ne.s32.totalorder %s74, %s76
      %p83 = scmp.eq.s32.totalorder %s24, 1
      %p84 = por %p82, %p83
      %p85 = scmp.ne.s32.totalorder %s76, %s77
      %p86 = scmp.eq.s32.totalorder %s24, 0
      %p87 = por %p85, %p86
      %p88 = scmp.ne.s32.totalorder %s76, %s77
      %p89 = scmp.eq.s32.totalorder %s25, 1
      %p90 = por %p88, %p89
      %p92 = scmp.ne.s32.totalorder %s77, %s91
      %p93 = scmp.eq.s32.totalorder %s25, 0
      %p94 = por %p92, %p93
      %s96 = sadd.s32 %s95, 1
      %p99 = scmp.eq.s32.totalorder %s19, 1
      %p100 = scmp.ne.s32.totalorder %s95, %s97
      %p101 = scmp.eq.s32.totalorder %s19, 0
      %p102 = por %p100, %p101
      %p103 = scmp.ne.s32.totalorder %s95, %s97
      %p104 = scmp.eq.s32.totalorder %s24, 1
      %p105 = por %p103, %p104
      %p106 = scmp.ne.s32.totalorder %s97, %s98
      %p107 = scmp.eq.s32.totalorder %s24, 0
      %p108 = por %p106, %p107
      %p109 = scmp.ne.s32.totalorder %s97, %s98
      %p110 = scmp.eq.s32.totalorder %s25, 1
      %p111 = por %p109, %p110
      %p113 = scmp.ne.s32.totalorder %s98, %s112
      %p114 = scmp.eq.s32.totalorder %s25, 0
      %p115 = por %p113, %p114
      %s117 = sadd.s32 %s116, 1
      %p120 = scmp.eq.s32.totalorder %s19, 1
      %p121 = scmp.ne.s32.totalorder %s116, %s118
      %p122 = scmp.eq.s32.totalorder %s19, 0
      %p123 = por %p121, %p122
      %p124 = scmp.ne.s32.totalorder %s116, %s118
      %p125 = scmp.eq.s32.totalorder %s24, 1
      %p126 = por %p124, %p125
      %p127 = scmp.ne.s32.totalorder %s118, %s119
      %p128 = scmp.eq.s32.totalorder %s24, 0
      %p129 = por %p127, %p128
      %p130 = scmp.ne.s32.totalorder %s118, %s119
      %p131 = scmp.eq.s32.totalorder %s25, 1
      %p132 = por %p130, %p131
      %p134 = scmp.ne.s32.totalorder %s119, %s133
      %p135 = scmp.eq.s32.totalorder %s25, 0
      %p136 = por %p134, %p135
      %s137 = ssub.s32 %s19, %s26
      %p138 = scmp.eq.s32.totalorder %s137, 0
      %s140 = sadd.s32 %s139, 1
      %s141 = scalar_select %p138, %s139, %s140
      %p144 = pneg %p138
      %p145 = scmp.eq.s32.totalorder %s19, 1
      %p146 = por %p144, %p145
      %p147 = scmp.ne.s32.totalorder %s139, %s142
      %p148 = scmp.eq.s32.totalorder %s19, 0
      %p149 = por %p147, %p148
      %p150 = scmp.ne.s32.totalorder %s139, %s142
      %p151 = scmp.eq.s32.totalorder %s24, 1
      %p152 = por %p150, %p151
      %p153 = scmp.ne.s32.totalorder %s142, %s143
      %p154 = scmp.eq.s32.totalorder %s24, 0
      %p155 = por %p153, %p154
      %p156 = scmp.ne.s32.totalorder %s142, %s143
      %p157 = scmp.eq.s32.totalorder %s25, 1
      %p158 = por %p156, %p157
      %p160 = scmp.ne.s32.totalorder %s143, %s159
      %p161 = scmp.eq.s32.totalorder %s25, 0
      %p162 = por %p160, %p161
      %p163 = scmp.le.s32.totalorder 1, %s19
      %p164 = scmp.lt.s32.totalorder %s19, 3
      %p165 = pnand %p163, %p164
      %p166 = pneg %p165
      // Predicated region
      $region9: #{tpu_custom_call.1} parent=5 // pred_check
        _
      $region10: #{tpu_custom_call.1} parent=5 // pred_check_branch
        %168 = sbr.rel (%p165) target = $region12
      $region11: #{tpu_custom_call.1} parent=5 // pred_region
        %s169 = ssub.s32 %s19, 1
        // Predicated region
        $region13: #{tpu_custom_call.1} parent=11 // pred_check
          %p170 = pneg %p66
        $region14: #{tpu_custom_call.1} parent=11 // pred_check_branch
          %172 = sbr.rel (%p170) target = $region16
        $region15: #{tpu_custom_call.1} parent=11 // pred_region
          _
        $region16: #{tpu_custom_call.1} parent=11 // pred_fallthru
          _
        // Predicated region
        $region17: #{tpu_custom_call.1} parent=11 // pred_check
          %p173 = pneg %p87
        $region18: #{tpu_custom_call.1} parent=11 // pred_check_branch
          %175 = sbr.rel (%p173) target = $region20
        $region19: #{tpu_custom_call.1} parent=11 // pred_region
          _
        $region20: #{tpu_custom_call.1} parent=11 // pred_fallthru
          _
        // Predicated region
        $region21: #{tpu_custom_call.1} parent=11 // pred_check
          %p176 = pneg %p108
        $region22: #{tpu_custom_call.1} parent=11 // pred_check_branch
          %178 = sbr.rel (%p176) target = $region24
        $region23: #{tpu_custom_call.1} parent=11 // pred_region
          _
        $region24: #{tpu_custom_call.1} parent=11 // pred_fallthru
          _
        // Predicated region
        $region25: #{tpu_custom_call.1} parent=11 // pred_check
          %p179 = pneg %p129
        $region26: #{tpu_custom_call.1} parent=11 // pred_check_branch
          %181 = sbr.rel (%p179) target = $region28
        $region27: #{tpu_custom_call.1} parent=11 // pred_region
          _
        $region28: #{tpu_custom_call.1} parent=11 // pred_fallthru
          _
      $region12: #{tpu_custom_call.1} parent=5 // pred_fallthru
        _
      %p182 = scmp.lt.s32.totalorder %s19, 2
      // Predicated region
      $region29: #{tpu_custom_call.1} parent=5 // pred_check
        %p183 = pneg %p182
      $region30: #{tpu_custom_call.1} parent=5 // pred_check_branch
        %185 = sbr.rel (%p183) target = $region32
      $region31: #{tpu_custom_call.1} parent=5 // pred_region
        // Predicated region
        $region33: #{tpu_custom_call.1} parent=31 // pred_check
          %p186 = pneg %p39
        $region34: #{tpu_custom_call.1} parent=31 // pred_check_branch
          %188 = sbr.rel (%p186) target = $region36
        $region35: #{tpu_custom_call.1} parent=31 // pred_region
          %s189 = sand.u32 %s29, 1
          %s190 = scalar_lea.sflag [#allocation5], %s189
          %s191 = sand.u32 %s29, 1
          %s192 = smul.addr %s191, 64
          %s193 = scalar_lea.vmem [#allocation4], %s192
          %s195 = ssub.s32 1024, 1024
          %196 = vsyncadd %s190, %s195
          %s197 = smul.addr %s19, 8
          %s198 = smul.addr %s197, 128
          %s199 = scalar_lea.hbm %s0, %s198
          %s200 = sshll.u32 %s193, 4
          %s201 = int_to_ptr.vmem [resolvable:$true] %s200
          %206 = dma.hbm_to_vmem [thread:$0]  %s199, 1024, %s201, %s190, 512, 512, 32
        $region36: #{tpu_custom_call.1} parent=31 // pred_fallthru
          _
      $region32: #{tpu_custom_call.1} parent=5 // pred_fallthru
        _
      %p207 = scmp.le.s32.totalorder 1, %s19
      %p208 = scmp.lt.s32.totalorder %s19, 3
      %p209 = pnand %p207, %p208
      %p210 = pneg %p209
      // Predicated region
      $region37: #{tpu_custom_call.1} parent=5 // pred_check
        _
      $region38: #{tpu_custom_call.1} parent=5 // pred_check_branch
        %212 = sbr.rel (%p209) target = $region40
      $region39: #{tpu_custom_call.1} parent=5 // pred_region
        %s213 = ssub.s32 %s19, 1
        %s214 = sand.u32 %s32, 1
        %s215 = scalar_lea.sflag [#allocation5], %s214
        %s216 = sand.u32 %s32, 1
        %s217 = smul.addr %s216, 64
        %s218 = scalar_lea.vmem [#allocation4], %s217
        // Predicated region
        $region41: #{tpu_custom_call.1} parent=39 // pred_check
          %p219 = pneg %p45
        $region42: #{tpu_custom_call.1} parent=39 // pred_check_branch
          %221 = sbr.rel (%p219) target = $region44
        $region43: #{tpu_custom_call.1} parent=39 // pred_region
          %222 = dma.done %s215, 1024
        $region44: #{tpu_custom_call.1} parent=39 // pred_fallthru
          _
        %s223 = sand.u32 %s32, 1
        %s224 = scalar_lea.sflag [#allocation5], %s223
        %s225 = sand.u32 %s32, 1
        %s226 = smul.addr %s225, 64
        %s227 = scalar_lea.vmem [#allocation4], %s226
        %p228 = pneg %p45
        %p229 = pneg %p42
        %p230 = pneg %p66
        %p231 = pneg %p63
        %p232 = pneg %p87
        %p233 = pneg %p84
        %p234 = pneg %p108
        %p235 = pneg %p105
        %p236 = pneg %p129
        %p237 = pneg %p126
        %p238 = pneg %p155
        %p239 = pneg %p152
        %s240 = sand.u32 %s142, 1
        %s241 = scalar_lea.sflag [#allocation6], %s240
        %s242 = sand.u32 %s142, 1
        %s243 = smul.addr %s242, 3
        %s244 = scalar_lea.vmem [#allocation7], %s243
        %v245 = vld [vmem:[%s218] sm:$0xff]
        %v246 = vld [vmem:[%s218 + $0x8] sm:$0xff]
        %v247 = vld [vmem:[%s218 + $0x10] sm:$0xff]
        %v248 = vld [vmem:[%s218 + $0x20] sm:$0xff]
        %v249 = vld [vmem:[%s218 + $0x28] sm:$0xff]
        %v250 = vld [vmem:[%s218 + $0x30] sm:$0xff]
        %251 = vst [vmem:[#allocation2] sm:$0xff] %v245
        %252 = vst [vmem:[#allocation2 + $0x8] sm:$0xff] %v246
        %253 = vst [vmem:[#allocation2 + $0x10] sm:$0xff] %v247
        %254 = vst [vmem:[#allocation2 + $0x18] sm:$0xff] %v248
        %255 = vst [vmem:[#allocation2 + $0x20] sm:$0xff] %v249
        %256 = vst [vmem:[#allocation2 + $0x28] sm:$0xff] %v250
        %v257 = vld [vmem:[%s218] sm:$0xff]
        %v258 = vld [vmem:[%s218 + $0x8] sm:$0xff]
        %v259 = vld [vmem:[%s218 + $0x10] sm:$0xff]
        %v260 = vld [vmem:[%s218 + $0x18] sm:$0xff]
        %v261 = vld [vmem:[%s218 + $0x20] sm:$0xff]
        %v262 = vld [vmem:[%s218 + $0x28] sm:$0xff]
        %v263 = vld [vmem:[%s218 + $0x30] sm:$0xff]
        %v264 = vld [vmem:[%s218 + $0x38] sm:$0xff]
        %273 = vrot.lane.b32.xlu0 %v257, 127
        %v274 = vpop.permute.xlu0 %273
        %275 = vrot.lane.b32.xlu0 %v258, 127
        %v276 = vpop.permute.xlu0 %275
        %277 = vrot.lane.b32.xlu0 %v259, 127
        %v278 = vpop.permute.xlu0 %277
        %279 = vrot.lane.b32.xlu0 %v260, 127
        %v280 = vpop.permute.xlu0 %279
        %281 = vrot.lane.b32.xlu0 %v261, 127
        %v282 = vpop.permute.xlu0 %281
        %283 = vrot.lane.b32.xlu0 %v262, 127
        %v284 = vpop.permute.xlu0 %283
        %285 = vrot.lane.b32.xlu0 %v263, 127
        %v286 = vpop.permute.xlu0 %285
        %287 = vrot.lane.b32.xlu0 %v264, 127
        %v288 = vpop.permute.xlu0 %287
        %vm289 = vcmask 1039360
        %v290 = vsel %vm289, %v274, %v276
        %v291 = vsel %vm289, %v276, %v278
        %v292 = vsel %vm289, %v278, %v280
        %v293 = vsel %vm289, %v282, %v284
        %v294 = vsel %vm289, %v284, %v286
        %v295 = vsel %vm289, %v286, %v288
        %302 = vst [vmem:[#allocation2 + $0x30] sm:$0xff] %v290
        %303 = vst [vmem:[#allocation2 + $0x38] sm:$0xff] %v291
        %304 = vst [vmem:[#allocation2 + $0x40] sm:$0xff] %v292
        %305 = vst [vmem:[#allocation2 + $0x48] sm:$0xff] %v293
        %306 = vst [vmem:[#allocation2 + $0x50] sm:$0xff] %v294
        %307 = vst [vmem:[#allocation2 + $0x58] sm:$0xff] %v295
        %v308 = vld [vmem:[%s218] sm:$0xff]
        %v309 = vld [vmem:[%s218 + $0x8] sm:$0xff]
        %v310 = vld [vmem:[%s218 + $0x10] sm:$0xff]
        %v311 = vld [vmem:[%s218 + $0x18] sm:$0xff]
        %v312 = vld [vmem:[%s218 + $0x20] sm:$0xff]
        %v313 = vld [vmem:[%s218 + $0x28] sm:$0xff]
        %v314 = vld [vmem:[%s218 + $0x30] sm:$0xff]
        %v315 = vld [vmem:[%s218 + $0x38] sm:$0xff]
        %324 = vrot.lane.b32.xlu0 %v308, 126
        %v325 = vpop.permute.xlu0 %324
        %326 = vrot.lane.b32.xlu0 %v309, 126
        %v327 = vpop.permute.xlu0 %326
        %328 = vrot.lane.b32.xlu0 %v310, 126
        %v329 = vpop.permute.xlu0 %328
        %330 = vrot.lane.b32.xlu0 %v311, 126
        %v331 = vpop.permute.xlu0 %330
        %332 = vrot.lane.b32.xlu0 %v312, 126
        %v333 = vpop.permute.xlu0 %332
        %334 = vrot.lane.b32.xlu0 %v313, 126
        %v335 = vpop.permute.xlu0 %334
        %336 = vrot.lane.b32.xlu0 %v314, 126
        %v337 = vpop.permute.xlu0 %336
        %338 = vrot.lane.b32.xlu0 %v315, 126
        %v339 = vpop.permute.xlu0 %338
        %vm340 = vcmask 1031168
        %v341 = vsel %vm340, %v325, %v327
        %v342 = vsel %vm340, %v327, %v329
        %v343 = vsel %vm340, %v329, %v331
        %v344 = vsel %vm340, %v333, %v335
        %v345 = vsel %vm340, %v335, %v337
        %v346 = vsel %vm340, %v337, %v339
        %353 = vst [vmem:[#allocation2 + $0x60] sm:$0xff] %v341
        %354 = vst [vmem:[#allocation2 + $0x68] sm:$0xff] %v342
        %355 = vst [vmem:[#allocation2 + $0x70] sm:$0xff] %v343
        %356 = vst [vmem:[#allocation2 + $0x78] sm:$0xff] %v344
        %357 = vst [vmem:[#allocation2 + $0x80] sm:$0xff] %v345
        %358 = vst [vmem:[#allocation2 + $0x88] sm:$0xff] %v346
        %v359 = vld [vmem:[%s218] sm:$0xff]
        %v360 = vld [vmem:[%s218 + $0x8] sm:$0xff]
        %v361 = vld [vmem:[%s218 + $0x10] sm:$0xff]
        %v362 = vld [vmem:[%s218 + $0x18] sm:$0xff]
        %v363 = vld [vmem:[%s218 + $0x20] sm:$0xff]
        %v364 = vld [vmem:[%s218 + $0x28] sm:$0xff]
        %v365 = vld [vmem:[%s218 + $0x30] sm:$0xff]
        %v366 = vld [vmem:[%s218 + $0x38] sm:$0xff]
        %375 = vrot.lane.b32.xlu0 %v359, 104
        %v376 = vpop.permute.xlu0 %375
        %377 = vrot.lane.b32.xlu0 %v360, 104
        %v378 = vpop.permute.xlu0 %377
        %379 = vrot.lane.b32.xlu0 %v361, 104
        %v380 = vpop.permute.xlu0 %379
        %381 = vrot.lane.b32.xlu0 %v362, 104
        %v382 = vpop.permute.xlu0 %381
        %383 = vrot.lane.b32.xlu0 %v363, 104
        %v384 = vpop.permute.xlu0 %383
        %385 = vrot.lane.b32.xlu0 %v364, 104
        %v386 = vpop.permute.xlu0 %385
        %387 = vrot.lane.b32.xlu0 %v365, 104
        %v388 = vpop.permute.xlu0 %387
        %389 = vrot.lane.b32.xlu0 %v366, 104
        %v390 = vpop.permute.xlu0 %389
        %vm391 = vcmask 850944
        %v392 = vsel %vm391, %v376, %v378
        %v393 = vsel %vm391, %v378, %v380
        %v394 = vsel %vm391, %v380, %v382
        %v395 = vsel %vm391, %v384, %v386
        %v396 = vsel %vm391, %v386, %v388
        %v397 = vsel %vm391, %v388, %v390
        %404 = vst [vmem:[#allocation2 + $0x90] sm:$0xff] %v392
        %405 = vst [vmem:[#allocation2 + $0x98] sm:$0xff] %v393
        %406 = vst [vmem:[#allocation2 + $0xa0] sm:$0xff] %v394
        %407 = vst [vmem:[#allocation2 + $0xa8] sm:$0xff] %v395
        %408 = vst [vmem:[#allocation2 + $0xb0] sm:$0xff] %v396
        %409 = vst [vmem:[#allocation2 + $0xb8] sm:$0xff] %v397
        %v410 = vld [vmem:[%s218] sm:$0xff]
        %v411 = vld [vmem:[%s218 + $0x8] sm:$0xff]
        %v412 = vld [vmem:[%s218 + $0x10] sm:$0xff]
        %v413 = vld [vmem:[%s218 + $0x18] sm:$0xff]
        %v414 = vld [vmem:[%s218 + $0x20] sm:$0xff]
        %v415 = vld [vmem:[%s218 + $0x28] sm:$0xff]
        %v416 = vld [vmem:[%s218 + $0x30] sm:$0xff]
        %v417 = vld [vmem:[%s218 + $0x38] sm:$0xff]
        %426 = vrot.lane.b32.xlu0 %v410, 103
        %v427 = vpop.permute.xlu0 %426
        %428 = vrot.lane.b32.xlu0 %v411, 103
        %v429 = vpop.permute.xlu0 %428
        %430 = vrot.lane.b32.xlu0 %v412, 103
        %v431 = vpop.permute.xlu0 %430
        %432 = vrot.lane.b32.xlu0 %v413, 103
        %v433 = vpop.permute.xlu0 %432
        %434 = vrot.lane.b32.xlu0 %v414, 103
        %v435 = vpop.permute.xlu0 %434
        %436 = vrot.lane.b32.xlu0 %v415, 103
        %v437 = vpop.permute.xlu0 %436
        %438 = vrot.lane.b32.xlu0 %v416, 103
        %v439 = vpop.permute.xlu0 %438
        %440 = vrot.lane.b32.xlu0 %v417, 103
        %v441 = vpop.permute.xlu0 %440
        %vm442 = vcmask 842752
        %v443 = vsel %vm442, %v427, %v429
        %v444 = vsel %vm442, %v429, %v431
        %v445 = vsel %vm442, %v431, %v433
        %v446 = vsel %vm442, %v435, %v437
        %v447 = vsel %vm442, %v437, %v439
        %v448 = vsel %vm442, %v439, %v441
        %455 = vst [vmem:[#allocation2 + $0xc0] sm:$0xff] %v443
        %456 = vst [vmem:[#allocation2 + $0xc8] sm:$0xff] %v444
        %457 = vst [vmem:[#allocation2 + $0xd0] sm:$0xff] %v445
        %458 = vst [vmem:[#allocation2 + $0xd8] sm:$0xff] %v446
        %459 = vst [vmem:[#allocation2 + $0xe0] sm:$0xff] %v447
        %460 = vst [vmem:[#allocation2 + $0xe8] sm:$0xff] %v448
        %v461 = vld [vmem:[%s218] sm:$0xff]
        %v462 = vld [vmem:[%s218 + $0x8] sm:$0xff]
        %v463 = vld [vmem:[%s218 + $0x10] sm:$0xff]
        %v464 = vld [vmem:[%s218 + $0x18] sm:$0xff]
        %v465 = vld [vmem:[%s218 + $0x20] sm:$0xff]
        %v466 = vld [vmem:[%s218 + $0x28] sm:$0xff]
        %v467 = vld [vmem:[%s218 + $0x30] sm:$0xff]
        %v468 = vld [vmem:[%s218 + $0x38] sm:$0xff]
        %477 = vrot.lane.b32.xlu0 %v461, 102
        %v478 = vpop.permute.xlu0 %477
        %479 = vrot.lane.b32.xlu0 %v462, 102
        %v480 = vpop.permute.xlu0 %479
        %481 = vrot.lane.b32.xlu0 %v463, 102
        %v482 = vpop.permute.xlu0 %481
        %483 = vrot.lane.b32.xlu0 %v464, 102
        %v484 = vpop.permute.xlu0 %483
        %485 = vrot.lane.b32.xlu0 %v465, 102
        %v486 = vpop.permute.xlu0 %485
        %487 = vrot.lane.b32.xlu0 %v466, 102
        %v488 = vpop.permute.xlu0 %487
        %489 = vrot.lane.b32.xlu0 %v467, 102
        %v490 = vpop.permute.xlu0 %489
        %491 = vrot.lane.b32.xlu0 %v468, 102
        %v492 = vpop.permute.xlu0 %491
        %vm493 = vcmask 834560
        %v494 = vsel %vm493, %v478, %v480
        %v495 = vsel %vm493, %v480, %v482
        %v496 = vsel %vm493, %v482, %v484
        %v497 = vsel %vm493, %v486, %v488
        %v498 = vsel %vm493, %v488, %v490
        %v499 = vsel %vm493, %v490, %v492
        %506 = vst [vmem:[#allocation2 + $0xf0] sm:$0xff] %v494
        %507 = vst [vmem:[#allocation2 + $0xf8] sm:$0xff] %v495
        %508 = vst [vmem:[#allocation2 + $0x100] sm:$0xff] %v496
        %509 = vst [vmem:[#allocation2 + $0x108] sm:$0xff] %v497
        %510 = vst [vmem:[#allocation2 + $0x110] sm:$0xff] %v498
        %511 = vst [vmem:[#allocation2 + $0x118] sm:$0xff] %v499
        %v512 = vld [vmem:[%s218] sm:$0xff]
        %v513 = vld [vmem:[%s218 + $0x8] sm:$0xff]
        %v514 = vld [vmem:[%s218 + $0x10] sm:$0xff]
        %v515 = vld [vmem:[%s218 + $0x18] sm:$0xff]
        %v516 = vld [vmem:[%s218 + $0x20] sm:$0xff]
        %v517 = vld [vmem:[%s218 + $0x28] sm:$0xff]
        %v518 = vld [vmem:[%s218 + $0x30] sm:$0xff]
        %v519 = vld [vmem:[%s218 + $0x38] sm:$0xff]
        %528 = vrot.lane.b32.xlu0 %v512, 80
        %v529 = vpop.permute.xlu0 %528
        %530 = vrot.lane.b32.xlu0 %v513, 80
        %v531 = vpop.permute.xlu0 %530
        %532 = vrot.lane.b32.xlu0 %v514, 80
        %v533 = vpop.permute.xlu0 %532
        %534 = vrot.lane.b32.xlu0 %v515, 80
        %v535 = vpop.permute.xlu0 %534
        %536 = vrot.lane.b32.xlu0 %v516, 80
        %v537 = vpop.permute.xlu0 %536
        %538 = vrot.lane.b32.xlu0 %v517, 80
        %v539 = vpop.permute.xlu0 %538
        %540 = vrot.lane.b32.xlu0 %v518, 80
        %v541 = vpop.permute.xlu0 %540
        %542 = vrot.lane.b32.xlu0 %v519, 80
        %v543 = vpop.permute.xlu0 %542
        %vm544 = vcmask 654336
        %v545 = vsel %vm544, %v529, %v531
        %v546 = vsel %vm544, %v531, %v533
        %v547 = vsel %vm544, %v533, %v535
        %v548 = vsel %vm544, %v537, %v539
        %v549 = vsel %vm544, %v539, %v541
        %v550 = vsel %vm544, %v541, %v543
        %557 = vst [vmem:[#allocation2 + $0x120] sm:$0xff] %v545
        %558 = vst [vmem:[#allocation2 + $0x128] sm:$0xff] %v546
        %559 = vst [vmem:[#allocation2 + $0x130] sm:$0xff] %v547
        %560 = vst [vmem:[#allocation2 + $0x138] sm:$0xff] %v548
        %561 = vst [vmem:[#allocation2 + $0x140] sm:$0xff] %v549
        %562 = vst [vmem:[#allocation2 + $0x148] sm:$0xff] %v550
        %v563 = vld [vmem:[%s218] sm:$0xff]
        %v564 = vld [vmem:[%s218 + $0x8] sm:$0xff]
        %v565 = vld [vmem:[%s218 + $0x10] sm:$0xff]
        %v566 = vld [vmem:[%s218 + $0x18] sm:$0xff]
        %v567 = vld [vmem:[%s218 + $0x20] sm:$0xff]
        %v568 = vld [vmem:[%s218 + $0x28] sm:$0xff]
        %v569 = vld [vmem:[%s218 + $0x30] sm:$0xff]
        %v570 = vld [vmem:[%s218 + $0x38] sm:$0xff]
        %579 = vrot.lane.b32.xlu0 %v563, 79
        %v580 = vpop.permute.xlu0 %579
        %581 = vrot.lane.b32.xlu0 %v564, 79
        %v582 = vpop.permute.xlu0 %581
        %583 = vrot.lane.b32.xlu0 %v565, 79
        %v584 = vpop.permute.xlu0 %583
        %585 = vrot.lane.b32.xlu0 %v566, 79
        %v586 = vpop.permute.xlu0 %585
        %587 = vrot.lane.b32.xlu0 %v567, 79
        %v588 = vpop.permute.xlu0 %587
        %589 = vrot.lane.b32.xlu0 %v568, 79
        %v590 = vpop.permute.xlu0 %589
        %591 = vrot.lane.b32.xlu0 %v569, 79
        %v592 = vpop.permute.xlu0 %591
        %593 = vrot.lane.b32.xlu0 %v570, 79
        %v594 = vpop.permute.xlu0 %593
        %vm595 = vcmask 646144
        %v596 = vsel %vm595, %v580, %v582
        %v597 = vsel %vm595, %v582, %v584
        %v598 = vsel %vm595, %v584, %v586
        %v599 = vsel %vm595, %v588, %v590
        %v600 = vsel %vm595, %v590, %v592
        %v601 = vsel %vm595, %v592, %v594
        %608 = vst [vmem:[#allocation2 + $0x150] sm:$0xff] %v596
        %609 = vst [vmem:[#allocation2 + $0x158] sm:$0xff] %v597
        %610 = vst [vmem:[#allocation2 + $0x160] sm:$0xff] %v598
        %611 = vst [vmem:[#allocation2 + $0x168] sm:$0xff] %v599
        %612 = vst [vmem:[#allocation2 + $0x170] sm:$0xff] %v600
        %613 = vst [vmem:[#allocation2 + $0x178] sm:$0xff] %v601
        %v614 = vld [vmem:[%s218] sm:$0xff]
        %v615 = vld [vmem:[%s218 + $0x8] sm:$0xff]
        %v616 = vld [vmem:[%s218 + $0x10] sm:$0xff]
        %v617 = vld [vmem:[%s218 + $0x18] sm:$0xff]
        %v618 = vld [vmem:[%s218 + $0x20] sm:$0xff]
        %v619 = vld [vmem:[%s218 + $0x28] sm:$0xff]
        %v620 = vld [vmem:[%s218 + $0x30] sm:$0xff]
        %v621 = vld [vmem:[%s218 + $0x38] sm:$0xff]
        %630 = vrot.lane.b32.xlu0 %v614, 78
        %v631 = vpop.permute.xlu0 %630
        %632 = vrot.lane.b32.xlu0 %v615, 78
        %v633 = vpop.permute.xlu0 %632
        %634 = vrot.lane.b32.xlu0 %v616, 78
        %v635 = vpop.permute.xlu0 %634
        %636 = vrot.lane.b32.xlu0 %v617, 78
        %v637 = vpop.permute.xlu0 %636
        %638 = vrot.lane.b32.xlu0 %v618, 78
        %v639 = vpop.permute.xlu0 %638
        %640 = vrot.lane.b32.xlu0 %v619, 78
        %v641 = vpop.permute.xlu0 %640
        %642 = vrot.lane.b32.xlu0 %v620, 78
        %v643 = vpop.permute.xlu0 %642
        %644 = vrot.lane.b32.xlu0 %v621, 78
        %v645 = vpop.permute.xlu0 %644
        %vm646 = vcmask 637952
        %v647 = vsel %vm646, %v631, %v633
        %v648 = vsel %vm646, %v633, %v635
        %v649 = vsel %vm646, %v635, %v637
        %v650 = vsel %vm646, %v639, %v641
        %v651 = vsel %vm646, %v641, %v643
        %v652 = vsel %vm646, %v643, %v645
        %659 = vst [vmem:[#allocation2 + $0x180] sm:$0xff] %v647
        %660 = vst [vmem:[#allocation2 + $0x188] sm:$0xff] %v648
        %661 = vst [vmem:[#allocation2 + $0x190] sm:$0xff] %v649
        %662 = vst [vmem:[#allocation2 + $0x198] sm:$0xff] %v650
        %663 = vst [vmem:[#allocation2 + $0x1a0] sm:$0xff] %v651
        %664 = vst [vmem:[#allocation2 + $0x1a8] sm:$0xff] %v652
        %v665 = vld [vmem:[%s1] sm:$0xff]
        %v666 = vld [vmem:[%s1 + $0x8] sm:$0xff]
        %v667 = vld [vmem:[#allocation2] sm:$0xff]
        %v668 = vld [vmem:[#allocation2 + $0x8] sm:$0xff]
        %v669 = vld [vmem:[#allocation2 + $0x10] sm:$0xff]
        %v670 = vld [vmem:[#allocation2 + $0x18] sm:$0xff]
        %v671 = vld [vmem:[#allocation2 + $0x20] sm:$0xff]
        %v672 = vld [vmem:[#allocation2 + $0x28] sm:$0xff]
        %v673 = vld [vmem:[#allocation2 + $0x30] sm:$0xff]
        %v674 = vld [vmem:[#allocation2 + $0x38] sm:$0xff]
        %v675 = vld [vmem:[#allocation2 + $0x40] sm:$0xff]
        %v676 = vld [vmem:[#allocation2 + $0x48] sm:$0xff]
        %v677 = vld [vmem:[#allocation2 + $0x50] sm:$0xff]
        %v678 = vld [vmem:[#allocation2 + $0x58] sm:$0xff]
        %v679 = vld [vmem:[#allocation2 + $0x60] sm:$0xff]
        %v680 = vld [vmem:[#allocation2 + $0x68] sm:$0xff]
        %v681 = vld [vmem:[#allocation2 + $0x70] sm:$0xff]
        %v682 = vld [vmem:[#allocation2 + $0x78] sm:$0xff]
        %v683 = vld [vmem:[#allocation2 + $0x80] sm:$0xff]
        %v684 = vld [vmem:[#allocation2 + $0x88] sm:$0xff]
        %v685 = vld [vmem:[#allocation2 + $0x90] sm:$0xff]
        %v686 = vld [vmem:[#allocation2 + $0x98] sm:$0xff]
        %v687 = vld [vmem:[#allocation2 + $0xa0] sm:$0xff]
        %v688 = vld [vmem:[#allocation2 + $0xa8] sm:$0xff]
        %v689 = vld [vmem:[#allocation2 + $0xb0] sm:$0xff]
        %v690 = vld [vmem:[#allocation2 + $0xb8] sm:$0xff]
        %v691 = vld [vmem:[#allocation2 + $0xc0] sm:$0xff]
        %v692 = vld [vmem:[#allocation2 + $0xc8] sm:$0xff]
        %v693 = vld [vmem:[#allocation2 + $0xd0] sm:$0xff]
        %v694 = vld [vmem:[#allocation2 + $0xd8] sm:$0xff]
        %v695 = vld [vmem:[#allocation2 + $0xe0] sm:$0xff]
        %v696 = vld [vmem:[#allocation2 + $0xe8] sm:$0xff]
        %v697 = vld [vmem:[#allocation2 + $0xf0] sm:$0xff]
        %v698 = vld [vmem:[#allocation2 + $0xf8] sm:$0xff]
        %v699 = vld [vmem:[#allocation2 + $0x100] sm:$0xff]
        %v700 = vld [vmem:[#allocation2 + $0x108] sm:$0xff]
        %v701 = vld [vmem:[#allocation2 + $0x110] sm:$0xff]
        %v702 = vld [vmem:[#allocation2 + $0x118] sm:$0xff]
        %v703 = vld [vmem:[#allocation2 + $0x120] sm:$0xff]
        %v704 = vld [vmem:[#allocation2 + $0x128] sm:$0xff]
        %v705 = vld [vmem:[#allocation2 + $0x130] sm:$0xff]
        %v706 = vld [vmem:[#allocation2 + $0x138] sm:$0xff]
        %v707 = vld [vmem:[#allocation2 + $0x140] sm:$0xff]
        %v708 = vld [vmem:[#allocation2 + $0x148] sm:$0xff]
        %v709 = vld [vmem:[#allocation2 + $0x150] sm:$0xff]
        %v710 = vld [vmem:[#allocation2 + $0x158] sm:$0xff]
        %v711 = vld [vmem:[#allocation2 + $0x160] sm:$0xff]
        %v712 = vld [vmem:[#allocation2 + $0x168] sm:$0xff]
        %v713 = vld [vmem:[#allocation2 + $0x170] sm:$0xff]
        %v714 = vld [vmem:[#allocation2 + $0x178] sm:$0xff]
        %v715 = vld [vmem:[#allocation2 + $0x180] sm:$0xff]
        %v716 = vld [vmem:[#allocation2 + $0x188] sm:$0xff]
        %v717 = vld [vmem:[#allocation2 + $0x190] sm:$0xff]
        %v718 = vld [vmem:[#allocation2 + $0x198] sm:$0xff]
        %v719 = vld [vmem:[#allocation2 + $0x1a0] sm:$0xff]
        %v720 = vld [vmem:[#allocation2 + $0x1a8] sm:$0xff]
        %v721 = vld [vmem:[%s2] sm:$0xff]
        %723 = vset.pattern.permute.xlu0 0
        %724 = vperm.xlu0 %723, %v721
        %v725 = vpop.permute.xlu0 %724
        %vm727 = vcmask 130048
        %v729 = vsel %vm727, %v666, 0
        %731 = vmatprep.subr.mxu0 %v668
        %732 = vmatpush1.msra.mxu0 %v667
        %733 = vmatprep.subr.mxu0 %v671
        %734 = vmatpush1.msra.mxu0 %v670
        %735 = vmatprep.subr.mxu0 %v674
        %736 = vmatpush1.msra.mxu0 %v673
        %737 = vmatprep.subr.mxu0 %v677
        %738 = vmatpush1.msra.mxu0 %v676
        %739 = vmatprep.subr.mxu0 %v680
        %740 = vmatpush1.msra.mxu0 %v679
        %741 = vmatprep.subr.mxu0 %v683
        %742 = vmatpush1.msra.mxu0 %v682
        %743 = vmatprep.subr.mxu0 %v686
        %744 = vmatpush1.msra.mxu0 %v685
        %745 = vmatprep.subr.mxu0 %v689
        %746 = vmatpush1.msra.mxu0 %v688
        %747 = vmatprep.subr.mxu0 %v692
        %748 = vmatpush1.msra.mxu0 %v691
        %749 = vmatprep.subr.mxu0 %v695
        %750 = vmatpush1.msra.mxu0 %v694
        %751 = vmatprep.subr.mxu0 %v698
        %752 = vmatpush1.msra.mxu0 %v697
        %753 = vmatprep.subr.mxu0 %v701
        %754 = vmatpush1.msra.mxu0 %v700
        %755 = vmatprep.subr.mxu0 %v704
        %756 = vmatpush1.msra.mxu0 %v703
        %757 = vmatprep.subr.mxu0 %v707
        %758 = vmatpush1.msra.mxu0 %v706
        %759 = vmatprep.subr.mxu0 %v710
        %760 = vmatpush1.msra.mxu0 %v709
        %761 = vmatprep.subr.mxu0 %v713
        %762 = vmatpush1.msra.mxu0 %v712
        %763 = vmatprep.subr.mxu0 %v716
        %764 = vmatpush1.msra.mxu0 %v715
        %765 = vmatprep.subr.mxu0 %v719
        %766 = vmatpush1.msra.mxu0 %v718
        %767 = vmatprep.subr.mxu0 0.0
        %768 = vmatpush1.msra.mxu0 0.0
        %769 = vmatprep.subr.mxu0 0.0
        %770 = vmatpush1.msra.mxu0 0.0
        %771 = vmatprep.subr.mxu0 0.0
        %772 = vmatpush1.msra.mxu0 0.0
        %773 = vmatprep.subr.mxu0 0.0
        %774 = vmatpush1.msra.mxu0 0.0
        %775 = vmatprep.subr.mxu0 0.0
        %776 = vmatpush1.msra.mxu0 0.0
        %777 = vmatprep.subr.mxu0 0.0
        %778 = vmatpush1.msra.mxu0 0.0
        %779 = vmatprep.subr.mxu0 0.0
        %780 = vmatpush1.msra.mxu0 0.0
        %781 = vmatprep.subr.mxu0 0.0
        %782 = vmatpush1.msra.mxu0 0.0
        %783 = vmatprep.subr.mxu0 0.0
        %784 = vmatpush1.msra.mxu0 0.0
        %785 = vmatprep.subr.mxu0 0.0
        %786 = vmatpush1.msra.mxu0 0.0
        %787 = vmatprep.subr.mxu0 0.0
        %788 = vmatpush1.msra.mxu0 0.0
        %789 = vmatprep.subr.mxu0 0.0
        %790 = vmatpush1.msra.mxu0 0.0
        %791 = vmatprep.subr.mxu0 0.0
        %792 = vmatpush1.msra.mxu0 0.0
        %793 = vmatprep.subr.mxu0 0.0
        %794 = vmatpush1.msra.mxu0 0.0
        %795 = vmatprep.mubr.f32.mxu0 %v729
        %796 = vmatmul.mubr.f32.gmra.mrb[0].mxu0 %v665
        %v797 = vpop.f32.mrb[0].mxu0
        %v798 = vadd.f32 %v725, %v797
        %v799 = vpop.f32.mrb[0].mxu0
        %v800 = vadd.f32 %v725, %v799
        %801 = vdwg.mxu0
        %802 = vmatprep.subr.mxu0 0.0
        %803 = vmatpush1.msra.mxu0 %v669
        %804 = vmatprep.subr.mxu0 0.0
        %805 = vmatpush1.msra.mxu0 %v672
        %806 = vmatprep.subr.mxu0 0.0
        %807 = vmatpush1.msra.mxu0 %v675
        %808 = vmatprep.subr.mxu0 0.0
        %809 = vmatpush1.msra.mxu0 %v678
        %810 = vmatprep.subr.mxu0 0.0
        %811 = vmatpush1.msra.mxu0 %v681
        %812 = vmatprep.subr.mxu0 0.0
        %813 = vmatpush1.msra.mxu0 %v684
        %814 = vmatprep.subr.mxu0 0.0
        %815 = vmatpush1.msra.mxu0 %v687
        %816 = vmatprep.subr.mxu0 0.0
        %817 = vmatpush1.msra.mxu0 %v690
        %818 = vmatprep.subr.mxu0 0.0
        %819 = vmatpush1.msra.mxu0 %v693
        %820 = vmatprep.subr.mxu0 0.0
        %821 = vmatpush1.msra.mxu0 %v696
        %822 = vmatprep.subr.mxu0 0.0
        %823 = vmatpush1.msra.mxu0 %v699
        %824 = vmatprep.subr.mxu0 0.0
        %825 = vmatpush1.msra.mxu0 %v702
        %826 = vmatprep.subr.mxu0 0.0
        %827 = vmatpush1.msra.mxu0 %v705
        %828 = vmatprep.subr.mxu0 0.0
        %829 = vmatpush1.msra.mxu0 %v708
        %830 = vmatprep.subr.mxu0 0.0
        %831 = vmatpush1.msra.mxu0 %v711
        %832 = vmatprep.subr.mxu0 0.0
        %833 = vmatpush1.msra.mxu0 %v714
        %834 = vmatprep.subr.mxu0 0.0
        %835 = vmatpush1.msra.mxu0 %v717
        %836 = vmatprep.subr.mxu0 0.0
        %837 = vmatpush1.msra.mxu0 %v720
        %838 = vmatprep.subr.mxu0 0.0
        %839 = vmatpush1.msra.mxu0 0.0
        %840 = vmatprep.subr.mxu0 0.0
        %841 = vmatpush1.msra.mxu0 0.0
        %842 = vmatprep.subr.mxu0 0.0
        %843 = vmatpush1.msra.mxu0 0.0
        %844 = vmatprep.subr.mxu0 0.0
        %845 = vmatpush1.msra.mxu0 0.0
        %846 = vmatprep.subr.mxu0 0.0
        %847 = vmatpush1.msra.mxu0 0.0
        %848 = vmatprep.subr.mxu0 0.0
        %849 = vmatpush1.msra.mxu0 0.0
        %850 = vmatprep.subr.mxu0 0.0
        %851 = vmatpush1.msra.mxu0 0.0
        %852 = vmatprep.subr.mxu0 0.0
        %853 = vmatpush1.msra.mxu0 0.0
        %854 = vmatprep.subr.mxu0 0.0
        %855 = vmatpush1.msra.mxu0 0.0
        %856 = vmatprep.subr.mxu0 0.0
        %857 = vmatpush1.msra.mxu0 0.0
        %858 = vmatprep.subr.mxu0 0.0
        %859 = vmatpush1.msra.mxu0 0.0
        %860 = vmatprep.subr.mxu0 0.0
        %861 = vmatpush1.msra.mxu0 0.0
        %862 = vmatprep.subr.mxu0 0.0
        %863 = vmatpush1.msra.mxu0 0.0
        %864 = vmatprep.subr.mxu0 0.0
        %865 = vmatpush1.msra.mxu0 0.0
        %866 = vmatprep.mubr.f32.mxu0 %v729
        %867 = vmatmul.mubr.f32.gmra.mrb[0].mxu0 %v665
        %v868 = vpop.f32.mrb[0].mxu0
        %v869 = vadd.f32 %v725, %v868
        %v870 = vpop.f32.mrb[0].mxu0
        %871 = vdwg.mxu0
        %v872 = vmax.f32 %v798, 0.0
        %v873 = vmax.f32 %v800, 0.0
        %v874 = vmax.f32 %v869, 0.0
        %v875 = vld [vmem:[%s3] sm:$0xff]
        %877 = vset.pattern.permute.xlu0 0
        %878 = vperm.xlu0 %877, %v875
        %v879 = vpop.permute.xlu0 %878
        %v881 = vmul.f32 %v872, %v879
        %v882 = vmul.f32 %v873, %v879
        %v883 = vmul.f32 %v874, %v879
        %v884 = vrot.slane %v881, 4
        %v885 = vadd.f32 %v881, %v884
        %v886 = vrot.slane %v885, 2
        %v887 = vadd.f32 %v885, %v886
        %v888 = vrot.slane %v887, 1
        %v889 = vadd.f32 %v887, %v888
        %v890 = vrot.slane %v882, 4
        %v891 = vadd.f32 %v882, %v890
        %v892 = vrot.slane %v891, 2
        %v893 = vadd.f32 %v891, %v892
        %v894 = vrot.slane %v893, 1
        %v895 = vadd.f32 %v893, %v894
        %v896 = vrot.slane %v883, 4
        %v897 = vadd.f32 %v883, %v896
        %v898 = vrot.slane %v897, 2
        %v899 = vadd.f32 %v897, %v898
        %v900 = vrot.slane %v899, 1
        %v901 = vadd.f32 %v899, %v900
        %v902 = vld [vmem:[#allocation3] sm:$0x1]
        %904 = vset.pattern.permute.xlu0 0
        %905 = vperm.xlu0 %904, %v902
        %v906 = vpop.permute.xlu0 %905
        %v908 = vlaneseq
        %v909 = vshrl.u32 %v908, 7
        %v910 = vsub.s32 0, %v909
        %v911 = vrot.slane %v906, %v910
        %v912 = vadd.f32 %v889, %v911
        %v913 = vadd.f32 %v895, %v911
        %v914 = vadd.f32 %v901, %v911
        %v918 = vcombine.low %v912, %v913
        %v920 = vunpack.c.l.s4 1966171168
        %v921 = vunpack.c.0.s8 %v920
        %v922 = vlaneseq
        %v923 = vshrl.u32 %v922, 7
        %v924 = vsub.s32 %v921, %v923
        %v925 = vrot.slane %v918, %v924
        %v927 = vunpack.c.l.s4 1966171168
        %v928 = vunpack.c.0.s8 %v927
        %v929 = vlaneseq
        %v930 = vshrl.u32 %v929, 7
        %v931 = vsub.s32 %v928, %v930
        %v932 = vrot.slane %v914, %v931
        %v933 = vcombine.low %v925, %v932
        %v935 = vunpack.c.l.s4 1966171168
        %v936 = vunpack.c.0.s8 %v935
        %v937 = vlaneseq
        %v938 = vshrl.u32 %v937, 7
        %v939 = vsub.s32 %v936, %v938
        %v940 = vrot.slane %v933, %v939
        %v942 = vlaneseq
        %vm943 = vcmp.ge.s32.totalorder %v942, 0
        %vm944 = vcmp.lt.s32.totalorder %v942, 384
        %vm945 = vmand %vm943, %vm944
        %946 = vst.msk [vmem:[%s244] sm:$0x7] %vm945, %v940
        %s947 = sand.u32 %s142, 1
        %s948 = scalar_lea.sflag [#allocation6], %s947
        %s949 = sand.u32 %s142, 1
        %s950 = smul.addr %s949, 3
        %s951 = scalar_lea.vmem [#allocation7], %s950
        // Predicated region
        $region45: #{tpu_custom_call.1} parent=39 // pred_check
          %p952 = pneg %p152
        $region46: #{tpu_custom_call.1} parent=39 // pred_check_branch
          %954 = sbr.rel (%p952) target = $region48
        $region47: #{tpu_custom_call.1} parent=39 // pred_region
          %s956 = ssub.s32 48, 48
          %957 = vsyncadd %s948, %s956
          %s958 = smul.addr %s24, 3
          %s959 = smul.addr %s958, 16
          %s960 = scalar_lea.hbm %s5, %s959
          %s962 = sshll.u32 %s951, 4
          %s963 = int_to_ptr.vmem [resolvable:$true] %s962
          %965 = dma.vmem_to_hbm [thread:$0]  %s963, 48, %s960, %s948
        $region48: #{tpu_custom_call.1} parent=39 // pred_fallthru
          _
      $region40: #{tpu_custom_call.1} parent=5 // pred_fallthru
        _
      %p966 = scmp.le.s32.totalorder 2, %s19
      // Predicated region
      $region49: #{tpu_custom_call.1} parent=5 // pred_check
        %p967 = pneg %p966
      $region50: #{tpu_custom_call.1} parent=5 // pred_check_branch
        %969 = sbr.rel (%p967) target = $region52
      $region51: #{tpu_custom_call.1} parent=5 // pred_region
        %s970 = ssub.s32 %s19, 2
        // Predicated region
        $region53: #{tpu_custom_call.1} parent=51 // pred_check
          %p971 = pneg %p158
        $region54: #{tpu_custom_call.1} parent=51 // pred_check_branch
          %973 = sbr.rel (%p971) target = $region56
        $region55: #{tpu_custom_call.1} parent=51 // pred_region
          %s974 = sand.u32 %s143, 1
          %s975 = scalar_lea.sflag [#allocation6], %s974
          %s976 = sand.u32 %s143, 1
          %s977 = smul.addr %s976, 3
          %s978 = scalar_lea.vmem [#allocation7], %s977
          %979 = dma.done %s975, 48
        $region56: #{tpu_custom_call.1} parent=51 // pred_fallthru
          _
      $region52: #{tpu_custom_call.1} parent=5 // pred_fallthru
        _
    $region6: #{tpu_custom_call.1} parent=1 // loop_footer
      %s23 = sadd.s32 1, %s19
    $region7: #{tpu_custom_call.1} parent=1 // loop_footer_branch
      %18 = sbr.rel target = $region3
    $region8: #{tpu_custom_call.1} parent=1 // loop_exit
      _
    %980 = vsyncpa [#allocation5], 1
    %s981 = scalar_lea.sflag [#allocation5], 1
    %982 = vsyncpa %s981, 1
    %983 = vsyncpa [#allocation6], 1
    %s984 = scalar_lea.sflag [#allocation6], 1
    %985 = vsyncpa %s984, 1

</llo_original>
